<compile_context>
chip_gen: v6e
topology: v6e:2x2x1
jax: 0.10.0
libtpu: 0.0.40
codegen_flags: <defaults>
</compile_context>

<pallas_src>
import functools

import jax
import jax.numpy as jnp
from jax.experimental import pallas as pl
from jax.experimental.pallas import tpu as pltpu


_LANE = 128
_SUBLANE = 8
# Per-block input byte budget; double-buffered this stays <= 16 MiB which fits
# the 32 MiB scoped-VMEM limit on every generation (incl. v7x's 64 MiB VMEM).
_BLOCK_BYTES = 8 * 1024 * 1024
# Largest H*W kept as a single (unsplit) reduction block.
_MAX_SINGLE_HW = 65536
# Cap on the per-step reduction-tile width when H*W must be split.
_MAX_TILE_HW = 8192


def _round_up(x, m):
    return ((x + m - 1) // m) * m


def _int_pow(x, p):
    """x ** p for a small positive integer p via square-and-multiply (VPU only)."""
    result = None
    base = x
    while p > 0:
        if p & 1:
            result = base if result is None else result * base
        p >>= 1
        if p:
            base = base * base
    return result


def _pow_p(xc, p_ref, int_p):
    if int_p is not None:
        return _int_pow(xc, int_p)
    p = p_ref[0]
    # x^p for x > 0  ==  exp(p * log(x)); clamp guarantees x >= eps > 0.
    return jnp.exp(p * jnp.log(xc))


def _finalize(row_sum, p_ref, int_p, hw, out_dtype):
    mean = row_sum * (1.0 / hw)                         # avg pool over H*W
    inv_p = (1.0 / float(int_p)) if int_p is not None else (1.0 / p_ref[0])
    # mean^(1/p) == exp(log(mean)/p); mean >= eps^p > 0 so log is safe.
    return jnp.exp(jnp.log(mean) * inv_p).astype(out_dtype)


def _gem_kernel_single(p_ref, x_ref, o_ref, *, eps, hw, int_p):
    """Single-pass kernel: the whole H*W reduction axis lives in one block."""
    xc = jnp.maximum(x_ref[...].astype(jnp.float32), eps)      # clamp(min=eps)
    xp = _pow_p(xc, p_ref, int_p)
    s = jnp.sum(xp, axis=-1, keepdims=True)
    o_ref[...] = _finalize(s, p_ref, int_p, hw, o_ref.dtype)


def _gem_kernel_multi(p_ref, x_ref, o_ref, acc_ref, *, eps, hw, tile_hw, int_p, rem):
    """Tiled-reduction kernel for very large H*W.

    acc_ref is a (TILE_NC, 128) f32 lane-dense partial-sum accumulator; the
    cross-lane reduce and the (TILE_NC, 1) store only happen on the last step.
    """
    k = pl.program_id(1)
    last = pl.num_programs(1) - 1

    @pl.when(k == 0)
    def _():
        acc_ref[...] = jnp.zeros_like(acc_ref)

    xc = jnp.maximum(x_ref[...].astype(jnp.float32), eps)      # clamp(min=eps)
    xp = _pow_p(xc, p_ref, int_p)
    n_slices = tile_hw // _LANE

    def _accumulate(vals):
        # 128-wide static lane slices: pure VPU adds, no per-step XLU reduce,
        # and 128-way partial sums improve f32 accuracy for huge H*W.
        s = vals[:, 0:_LANE]
        for j in range(1, n_slices):
            s = s + vals[:, j * _LANE:(j + 1) * _LANE]
        acc_ref[...] += s

    if rem:
        # Last H*W tile is partial: only pay the iota + where mask on that step.
        @pl.when(k < last)
        def _():
            _accumulate(xp)

        @pl.when(k == last)
        def _():
            col = jax.lax.broadcasted_iota(jnp.int32, xp.shape, 1)
            _accumulate(jnp.where(col < rem, xp, 0.0))
    else:
        _accumulate(xp)

    @pl.when(k == last)
    def _():
        total = jnp.sum(acc_ref[...], axis=-1, keepdims=True)
        o_ref[...] = _finalize(total, p_ref, int_p, hw, o_ref.dtype)


def _choose_tiles(nc, hw, itemsize):
    """Pick (tile_nc, tile_hw); tile_hw == hw selects the single-pass kernel."""
    row_bytes = hw * itemsize
    rows_budget = max(_BLOCK_BYTES // max(row_bytes, 1), 1)

    if hw <= _MAX_SINGLE_HW and (rows_budget >= _SUBLANE or rows_budget >= nc):
        # Whole reduction axis per block: contiguous DMA, no mask, no scratch.
        if nc < 2 * _SUBLANE:
            tile_nc = nc if nc <= rows_budget else _SUBLANE
        else:
            # Split NC into >= 2 blocks so the "parallel" axis can shard across
            # the two TensorCores on v7x; keep blocks a multiple of 8 rows and
            # within the per-block byte budget (don't chase oversized tiles).
            tile_nc = _round_up(pl.cdiv(nc, 2), _SUBLANE)
            tile_nc = min(tile_nc, (rows_budget // _SUBLANE) * _SUBLANE, 512)
            tile_nc = max(tile_nc, _SUBLANE)
        return tile_nc, hw

    # H*W too large for a full-row block: tile it in multiples of 128 lanes.
    if nc < 2 * _SUBLANE:
        tile_nc = nc if nc <= _SUBLANE else _SUBLANE
    else:
        tile_nc = max(min(_round_up(pl.cdiv(nc, 2), _SUBLANE), 256), _SUBLANE)
    tile_hw = (_BLOCK_BYTES // (tile_nc * itemsize)) // _LANE * _LANE
    tile_hw = max(min(tile_hw, _MAX_TILE_HW), _LANE)
    return tile_nc, tile_hw


def gem_pallas(x_nchw, p, eps=1e-06):
    """GeM pooling. x_nchw: (N, C, H, W); p: scalar / (1,) array. -> (N, C, 1, 1)."""
    n, c, h, w = x_nchw.shape
    nc, hw = n * c, h * w
    x2d = x_nchw.reshape(nc, hw)                     # free view; keep input dtype
    p_arr = jnp.asarray(p, dtype=jnp.float32).reshape((1,))

    # Integer-p fast path when p is statically known (the module default p=3).
    # NOTE: if p is a jit tracer this silently falls back to the exp/log path;
    # pass p as a concrete array / Python scalar to keep the VPU fast path.
    int_p = None
    try:
        p_val = float(p_arr.reshape(()))             # raises if p is a tracer
        if p_val == round(p_val) and 1 <= round(p_val) <= 16:
            int_p = int(round(p_val))
    except Exception:
        int_p = None

    tile_nc, tile_hw = _choose_tiles(nc, hw, x2d.dtype.itemsize)
    grid_nc = pl.cdiv(nc, tile_nc)

    n_elem = nc * hw
    cost = pl.CostEstimate(
        flops=6 * n_elem,
        transcendentals=(2 * nc) if int_p is not None else (2 * n_elem + 2 * nc),
        bytes_accessed=n_elem * x2d.dtype.itemsize + nc * x2d.dtype.itemsize + 4,
    )

    if tile_hw == hw:
        kernel = functools.partial(
            _gem_kernel_single, eps=float(eps), hw=hw, int_p=int_p)
        out = pl.pallas_call(
            kernel,
            out_shape=jax.ShapeDtypeStruct((nc, 1), x2d.dtype),
            grid=(grid_nc,),
            in_specs=[
                pl.BlockSpec(memory_space=pltpu.MemorySpace.SMEM),    # p parameter
                pl.BlockSpec((tile_nc, hw), lambda i: (i, 0)),        # x blocks
            ],
            out_specs=pl.BlockSpec((tile_nc, 1), lambda i: (i, 0)),
            compiler_params=pltpu.CompilerParams(
                dimension_semantics=("parallel",),
                vmem_limit_bytes=32 * 1024 * 1024,
            ),
            cost_estimate=cost,
        )(p_arr, x2d)
    else:
        grid_hw = pl.cdiv(hw, tile_hw)
        rem = hw - (grid_hw - 1) * tile_hw
        rem = 0 if rem == tile_hw else rem           # 0 => no masking needed
        kernel = functools.partial(
            _gem_kernel_multi, eps=float(eps), hw=hw, tile_hw=tile_hw,
            int_p=int_p, rem=rem)
        out = pl.pallas_call(
            kernel,
            out_shape=jax.ShapeDtypeStruct((nc, 1), x2d.dtype),
            grid=(grid_nc, grid_hw),
            in_specs=[
                pl.BlockSpec(memory_space=pltpu.MemorySpace.SMEM),       # p parameter
                pl.BlockSpec((tile_nc, tile_hw), lambda i, k: (i, k)),   # x tiles
            ],
            out_specs=pl.BlockSpec((tile_nc, 1), lambda i, k: (i, 0)),
            scratch_shapes=[pltpu.VMEM((tile_nc, _LANE), jnp.float32)],
            compiler_params=pltpu.CompilerParams(
                dimension_semantics=("parallel", "arbitrary"),
                vmem_limit_bytes=32 * 1024 * 1024,
            ),
            cost_estimate=cost,
        )(p_arr, x2d)

    return out.reshape(n, c, 1, 1)


def gem_reference(x, p, eps=1e-06):
    xc = jnp.maximum(x.astype(jnp.float32), eps)
    mean = jnp.mean(xc ** p, axis=(-2, -1), keepdims=True)
    return (mean ** (1.0 / p)).astype(x.dtype)


if __name__ == "__main__":
    eps = 1e-06

    # GeM.__init__ default: p = ones(1) * 3 (learnable parameter).
    p_param = jnp.ones((1,), dtype=jnp.float32) * 3.0

    # 1) Module-default small NCHW input: single full-H*W block.
    x = jax.random.uniform(jax.random.PRNGKey(0), (2, 4, 16, 16), dtype=jnp.float32)
    out = jax.block_until_ready(gem_pallas(x, p_param, eps=eps))
    ref = gem_reference(x, p_param[0], eps=eps)
    assert out.shape == (2, 4, 1, 1), out.shape
    assert jnp.allclose(out, ref, atol=1e-5, rtol=1e-5), (out, ref)

    # 2) Non-128-multiple H*W (48*48 = 2304) kept as ONE contiguous block
    #    (previously split 2048 + masked 256 for no reason).
    x2 = jax.random.uniform(jax.random.PRNGKey(1), (1, 8, 48, 48), dtype=jnp.float32)
    out2 = jax.block_until_ready(gem_pallas(x2, p_param, eps=eps))
    ref2 = gem_reference(x2, p_param[0], eps=eps)
    assert jnp.allclose(out2, ref2, atol=1e-5, rtol=1e-5)

    # 3) Fractional-p (exp/log) path and tiny odd spatial dims.
    p_frac = jnp.ones((1,), dtype=jnp.float32) * 2.5
    x3 = jax.random.uniform(jax.random.PRNGKey(2), (1, 3, 7, 7), dtype=jnp.float32)
    out3 = jax.block_until_ready(gem_pallas(x3, p_frac, eps=eps))
    ref3 = gem_reference(x3, p_frac[0], eps=eps)
    assert jnp.allclose(out3, ref3, atol=1e-5, rtol=1e-5)

    # 4) NC split into >=2 blocks (v7x TensorCore sharding) with a partial
    #    last NC block (nc = 40 -> blocks of 24 + 16).
    x4 = jax.random.uniform(jax.random.PRNGKey(3), (2, 20, 12, 12), dtype=jnp.float32)
    out4 = jax.block_until_ready(gem_pallas(x4, p_param, eps=eps))
    ref4 = gem_reference(x4, p_param[0], eps=eps)
    assert jnp.allclose(out4, ref4, atol=1e-5, rtol=1e-5)

    # 5) Very large H*W (272*272 = 73984): tiled-reduction kernel with the
    #    lane-dense accumulator and a masked final tile.
    x5 = jax.random.uniform(jax.random.PRNGKey(4), (1, 4, 272, 272), dtype=jnp.float32)
    out5 = jax.block_until_ready(gem_pallas(x5, p_param, eps=eps))
    ref5 = gem_reference(x5, p_param[0], eps=eps)
    assert jnp.allclose(out5, ref5, atol=5e-5, rtol=5e-5)

    print("KERNEL_OK")
</pallas_src>

<mosaic_0001>
module attributes {stable_mosaic.version = 11 : i64} {
  func.func @_gem_kernel_single(%arg0: i32, %arg1: memref<1xf32, #tpu.memory_space<smem>>, %arg2: memref<8x256xf32, #tpu.memory_space<vmem>>, %arg3: memref<8x1xf32, #tpu.memory_space<vmem>>) attributes {dimension_semantics = [#tpu.dimension_semantics<parallel>], iteration_bounds = array<i64: 1>, scalar_prefetch = 0 : i64, scratch_operands = 0 : i64, tpu.core_type = #tpu.core_type<tc>, window_params = [{transform_indices = @transform_0, window_bounds = array<i64: 1>}, {transform_indices = @transform_1, window_bounds = array<i64: 8, 256>}, {transform_indices = @transform_2, window_bounds = array<i64: 8, 1>}]} {
    %c0 = arith.constant 0 : index
    %c0_0 = arith.constant 0 : index
    %0 = vector.load %arg2[%c0, %c0_0] : memref<8x256xf32, #tpu.memory_space<vmem>>, vector<8x256xf32>
    %cst = arith.constant 9.99999997E-7 : f32
    %1 = vector.broadcast %cst : f32 to vector<8x256xf32>
    %2 = arith.maximumf %0, %1 : vector<8x256xf32>
    %3 = arith.mulf %2, %2 : vector<8x256xf32>
    %4 = arith.mulf %2, %3 : vector<8x256xf32>
    %cst_1 = arith.constant dense<0.000000e+00> : vector<8xf32>
    %5 = vector.multi_reduction <add>, %4, %cst_1 [1] : vector<8x256xf32> to vector<8xf32>
    %6 = vector.shape_cast %5 : vector<8xf32> to vector<8x1xf32>
    %cst_2 = arith.constant 3.906250e-03 : f32
    %7 = vector.broadcast %cst_2 : f32 to vector<8x1xf32>
    %8 = arith.mulf %6, %7 : vector<8x1xf32>
    %9 = math.log %8 : vector<8x1xf32>
    %cst_3 = arith.constant 0.333333343 : f32
    %10 = vector.broadcast %cst_3 : f32 to vector<8x1xf32>
    %11 = arith.mulf %9, %10 : vector<8x1xf32>
    %12 = math.exp %11 : vector<8x1xf32>
    %c0_4 = arith.constant 0 : index
    %c0_5 = arith.constant 0 : index
    %13 = vector.load %arg3[%c0_4, %c0_5] : memref<8x1xf32, #tpu.memory_space<vmem>>, vector<8x1xf32>
    tpu.vector_store %arg3[%c0_4, %c0_5], %12 {strides = array<i32>} : memref<8x1xf32, #tpu.memory_space<vmem>>, vector<8x1xf32>,
    return
  }
  func.func @transform_0(%arg0: i32) -> i32 {
    %c0_i32 = arith.constant 0 : i32
    %c0_i32_0 = arith.constant 0 : i32
    return %c0_i32 : i32
  }
  func.func @transform_1(%arg0: i32) -> (i32, i32) {
    %c0_i32 = arith.constant 0 : i32
    %c0_i32_0 = arith.constant 0 : i32
    return %arg0, %c0_i32 : i32, i32
  }
  func.func @transform_2(%arg0: i32) -> (i32, i32) {
    %c0_i32 = arith.constant 0 : i32
    %c0_i32_0 = arith.constant 0 : i32
    return %arg0, %c0_i32 : i32, i32
  }
}

</mosaic_0001>

<llo_original>
// kernel: tpu_custom_call.1
$region0: #{tpu_custom_call.1}
  #allocation0 [shape = 'u32[]', space=smem, size = 0x4, offset = 0x4, fixed_abs, tag = 'smem constant byte address 0x4 - core index']
  #allocation1 [shape = 'u32[144,128]{1,0:T(1,128)}', space=vmem, size = 0x12000, scoped, tag = 'internal scratch']
  #allocation2 [shape = 'f32[1]{0:T(128)S(6)}', space=smem, size = 0x200, scoped, tag = 'scoped memory for tpu_custom_call.1']
  %s0 = inlined_call_operand.<no memory space> [shape: f32[1], index: 0, kind: input, shape index: {}]
  %s1 = inlined_call_operand.hbm [shape: f32[8,256], index: 1, kind: input, shape index: {}]
  %s2 = inlined_call_operand.vmem [shape: f32[8,1], index: 2, kind: output, shape index: {}]
  %s3 = sld [smem:[#allocation0]]
  $region22: #{tpu_custom_call.1} parent=0
    _
  %s5 = ssub.s32 1, %s3
  %s6 = scalar_select 0, %s5, %s3
  %7 = sst [smem:[#allocation2]] %s0
  $region1: #{tpu_custom_call.1} parent=0
    #allocation3 [shape = 'u8[8192]{0}', space=vmem, size = 0x2000, scoped, tag = 'input window, operand 1, single buffered']
    #allocation4 [shape = 's32[1]{0}', space=sflag, size = 0x4, scoped, tag = 'scoped memory for tpu_custom_call.1']
    %8 = vsyncpa [#allocation4], 0
    // Predicated region
    $region2: #{tpu_custom_call.1} parent=1 // pred_check
      _
    $region3: #{tpu_custom_call.1} parent=1 // pred_check_branch
      %10 = sbr.rel (0) target = $region5
    $region4: #{tpu_custom_call.1} parent=1 // pred_region
      _
    $region5: #{tpu_custom_call.1} parent=1 // pred_fallthru
      _
    // Predicated region
    $region6: #{tpu_custom_call.1} parent=1 // pred_check
      _
    $region7: #{tpu_custom_call.1} parent=1 // pred_check_branch
      %12 = sbr.rel (0) target = $region9
    $region8: #{tpu_custom_call.1} parent=1 // pred_region
      %s14 = ssub.s32 256, 256
      %15 = vsyncadd [#allocation4], %s14
      %s17 = sshll.u32 [#allocation3], 4
      %s18 = int_to_ptr.vmem [resolvable:$true] %s17
      %20 = dma.hbm_to_vmem [thread:$0]  %s1, 256, %s18, [#allocation4]
    $region9: #{tpu_custom_call.1} parent=1 // pred_fallthru
      _
    // Predicated region
    $region10: #{tpu_custom_call.1} parent=1 // pred_check
      _
    $region11: #{tpu_custom_call.1} parent=1 // pred_check_branch
      %22 = sbr.rel (0) target = $region13
    $region12: #{tpu_custom_call.1} parent=1 // pred_region
      %23 = dma.done [#allocation4], 256
    $region13: #{tpu_custom_call.1} parent=1 // pred_fallthru
      _
    %v24 = vld [vmem:[#allocation3] sm:$0xff]
    %v25 = vld [vmem:[#allocation3 + $0x8] sm:$0xff]
    %v26 = vmax.f32 %v24, 1e-06
    %v27 = vmax.f32 %v25, 1e-06
    %v28 = vmul.f32 %v26, %v26
    %v29 = vmul.f32 %v27, %v27
    %v30 = vmul.f32 %v26, %v28
    %v31 = vmul.f32 %v27, %v29
    %v32 = vadd.f32 %v30, %v31
    %33 = vadd.xlane.f32.xlu0 %v32
    %v34 = vpop.xlane.xlu0 %33
    %v35 = vmul.f32 %v34, 0.00390625
    %v36 = vlog2.pop %v35
    %v37 = vmul.f32 %v36, 0.6931472
    %v38 = vmul.f32 %v37, 0.33333334
    %v39 = vmul.f32 %v38, 1.442695
    %v40 = vpow.pop %v39
    %vm41 = vcmask 7168
    %42 = vst.msk [vmem:[%s2] sm:$0xff] %vm41, %v40
    // Predicated region
    $region14: #{tpu_custom_call.1} parent=1 // pred_check
      _
    $region15: #{tpu_custom_call.1} parent=1 // pred_check_branch
      %44 = sbr.rel (0) target = $region17
    $region16: #{tpu_custom_call.1} parent=1 // pred_region
      _
    $region17: #{tpu_custom_call.1} parent=1 // pred_fallthru
      _
    // Predicated region
    $region18: #{tpu_custom_call.1} parent=1 // pred_check
      _
    $region19: #{tpu_custom_call.1} parent=1 // pred_check_branch
      %46 = sbr.rel (0) target = $region21
    $region20: #{tpu_custom_call.1} parent=1 // pred_region
      _
    $region21: #{tpu_custom_call.1} parent=1 // pred_fallthru
      _
    %47 = vsyncpa [#allocation4], 1

</llo_original>
